<compile_context>
chip_gen: v7x
topology: tpu7x:2x2x1
jax: 0.10.0
libtpu: 0.0.40
codegen_flags: <defaults>
</compile_context>

<pallas_src>
import jax
import jax.numpy as jnp
from jax.experimental import pallas as pl
from jax.experimental.pallas import tpu as pltpu


_LANES = 512                    # lane-dense last dim for flattened slabs
_TILE_ROWS = 2048               # default max rows per block (4 MiB @ f32 x 512 lanes)
_MAX_BLOCK_LANES = 2048         # cap on lane-block width (multiple of 128)
_BLOCK_BYTES = 4 << 20          # target bytes per input block
_MIN_PALLAS_ELEMS = 8 * 128     # below this, XLA fusion beats pallas_call overhead
_SUBLANE = {4: 8, 2: 16, 1: 32}  # dtype-itemsize -> min sublane multiple


def _round_up(a: int, b: int) -> int:
    return ((a + b - 1) // b) * b


def _linreg_kernel(w_ref, b_ref, x_ref, o_ref):
    # w_ref / b_ref are f32 scalars in SMEM; x_ref / o_ref are VMEM tiles.
    # Compute in f32 (VPU upcast is free), cast only the output.
    x = x_ref[...].astype(jnp.float32)
    o_ref[...] = (w_ref[0] * x + b_ref[0]).astype(o_ref.dtype)


def _run_2d(x2: jax.Array, w: jax.Array, b: jax.Array, out_dtype, tile_rows: int):
    """Runs y = w*x + b over a 2-D array with masked ragged edges (no copies)."""
    R, C = x2.shape
    in_item = x2.dtype.itemsize
    out_item = jnp.dtype(out_dtype).itemsize
    sub = _SUBLANE[min(in_item, out_item)]

    # Lane block: full last dim when it fits, else a 128-multiple cap (masked edge).
    tc = C if C <= _MAX_BLOCK_LANES else _MAX_BLOCK_LANES

    # Row block: byte budget, user cap, dtype-aware sublane rounding.
    budget_rows = max(sub, (_BLOCK_BYTES // (tc * in_item)) // sub * sub)
    max_rows = min(max(tile_rows, sub), budget_rows)
    if R <= max_rows:
        # Whole slab fits in one block; split rows in two so both v7x TCs get
        # a grid step (costs nothing on v5e/v6e).
        tr = _round_up(pl.cdiv(R, 2), sub) if R >= 2 * sub else R
    else:
        tr = max(sub, (max_rows // sub) * sub)

    grid = (pl.cdiv(R, tr), pl.cdiv(C, tc))

    # Double-buffered in + out blocks, with headroom; covers v5e's 16 MiB default.
    vmem_needed = 2 * tr * tc * (in_item + out_item) + (4 << 20)
    vmem_limit = int(min(64 << 20, max(32 << 20, vmem_needed)))

    return pl.pallas_call(
        _linreg_kernel,
        out_shape=jax.ShapeDtypeStruct((R, C), out_dtype),
        grid_spec=pltpu.PrefetchScalarGridSpec(
            num_scalar_prefetch=0,
            grid=grid,
            in_specs=[
                pl.BlockSpec(memory_space=pltpu.MemorySpace.SMEM),  # weights (1,) f32
                pl.BlockSpec(memory_space=pltpu.MemorySpace.SMEM),  # bias (1,) f32
                pl.BlockSpec((tr, tc), lambda i, j: (i, j)),
            ],
            out_specs=pl.BlockSpec((tr, tc), lambda i, j: (i, j)),
        ),
        compiler_params=pltpu.CompilerParams(
            dimension_semantics=("parallel", "parallel"),
            vmem_limit_bytes=vmem_limit,
        ),
        cost_estimate=pl.CostEstimate(
            flops=2 * R * C,
            transcendentals=0,
            bytes_accessed=R * C * (in_item + out_item) + 8,
        ),
    )(w, b, x2)


def linear_regression_forward(
    x: jax.Array,
    weights: jax.Array,
    bias: jax.Array,
    *,
    tile_rows: int = _TILE_ROWS,
    force_pallas: bool = False,
) -> jax.Array:
    """Computes weights * x + bias with scalar weights/bias of shape (1,)."""
    n = x.size
    out_dtype = jnp.promote_types(x.dtype, weights.dtype)
    w32 = weights.reshape(1).astype(jnp.float32)
    b32 = bias.reshape(1).astype(jnp.float32)

    def _xla(v):
        # Plain fused XLA elementwise path (already at HBM roofline for tiny sizes).
        return (w32[0] * v.astype(jnp.float32) + b32[0]).astype(out_dtype)

    if n == 0 or x.ndim == 0 or (not force_pallas and n < _MIN_PALLAS_ELEMS):
        return _xla(x)

    orig_shape = x.shape

    if n % _LANES == 0:
        # Fast path: free reshape to a lane-dense slab, no pad, no slice.
        y2 = _run_2d(x.reshape(n // _LANES, _LANES), w32, b32, out_dtype, tile_rows)
        return y2.reshape(orig_shape)

    last = x.shape[-1]
    if last >= 128:
        # Native 2-D path: collapse leading dims (free); ragged edges are masked
        # inside the kernel grid instead of padded in the wrapper.
        x2 = x.reshape(1, -1) if x.ndim == 1 else x.reshape(-1, last)
        y2 = _run_2d(x2, w32, b32, out_dtype, tile_rows)
        return y2.reshape(orig_shape)

    # Ragged total with a small last dim: run the 512-aligned bulk through the
    # kernel and handle the <512-element tail with plain XLA.
    n_bulk = (n // _LANES) * _LANES
    if n_bulk == 0:
        return _xla(x)
    x_flat = x.reshape(-1)
    y_bulk = _run_2d(
        x_flat[:n_bulk].reshape(n_bulk // _LANES, _LANES), w32, b32, out_dtype, tile_rows
    ).reshape(-1)
    y_tail = _xla(x_flat[n_bulk:])
    return jnp.concatenate([y_bulk, y_tail]).reshape(orig_shape)


if __name__ == "__main__":
    key = jax.random.PRNGKey(0)
    k_w, k_b, k_x1, k_x2, k_x3 = jax.random.split(key, 5)

    # Parameters matching nn.Parameter(torch.randn(1)) shapes/dtypes.
    weights = jax.random.normal(k_w, (1,), dtype=jnp.float32)
    bias = jax.random.normal(k_b, (1,), dtype=jnp.float32)

    # Case 1: 4-D input (batch=2, channels=4, 16x16). n = 2048 is a multiple of
    # 512 -> lane-dense fast path with zero wrapper copies.
    x1 = jax.random.normal(k_x1, (2, 4, 16, 16), dtype=jnp.float32)
    y1 = jax.block_until_ready(linear_regression_forward(x1, weights, bias))
    ref1 = weights[0] * x1 + bias[0]
    assert y1.shape == x1.shape and y1.dtype == x1.dtype
    assert jnp.allclose(y1, ref1, atol=1e-6, rtol=1e-6)

    # Case 2: ragged 2-D input (130, 257) -> native-shape path, multi-step row
    # grid (tile_rows=64) with a masked trailing partial block; no pad/slice.
    x2 = jax.random.normal(k_x2, (130, 257), dtype=jnp.float32)
    y2 = jax.block_until_ready(
        linear_regression_forward(x2, weights, bias, tile_rows=64)
    )
    ref2 = weights[0] * x2 + bias[0]
    assert y2.shape == x2.shape and y2.dtype == x2.dtype
    assert jnp.allclose(y2, ref2, atol=1e-6, rtol=1e-6)

    # Case 3: ragged total with a small last dim (5, 7, 31) -> 512-aligned bulk
    # through the kernel + XLA tail.
    x3 = jax.random.normal(k_x3, (5, 7, 31), dtype=jnp.float32)
    y3 = jax.block_until_ready(
        linear_regression_forward(x3, weights, bias, force_pallas=True)
    )
    ref3 = weights[0] * x3 + bias[0]
    assert y3.shape == x3.shape and y3.dtype == x3.dtype
    assert jnp.allclose(y3, ref3, atol=1e-6, rtol=1e-6)

    print("KERNEL_OK")
</pallas_src>

<mosaic_0001>
module attributes {stable_mosaic.version = 11 : i64} {
  func.func @_linreg_kernel(%arg0: i32, %arg1: i32, %arg2: memref<1xf32, #tpu.memory_space<smem>>, %arg3: memref<1xf32, #tpu.memory_space<smem>>, %arg4: memref<4x512xf32, #tpu.memory_space<vmem>>, %arg5: memref<4x512xf32, #tpu.memory_space<vmem>>) attributes {dimension_semantics = [#tpu.dimension_semantics<parallel>, #tpu.dimension_semantics<parallel>], iteration_bounds = array<i64: 1, 1>, scalar_prefetch = 0 : i64, scratch_operands = 0 : i64, tpu.core_type = #tpu.core_type<tc>, window_params = [{transform_indices = @transform_0, window_bounds = array<i64: 1>}, {transform_indices = @transform_1, window_bounds = array<i64: 1>}, {transform_indices = @transform_2, window_bounds = array<i64: 4, 512>}, {transform_indices = @transform_3, window_bounds = array<i64: 4, 512>}]} {
    %c0 = arith.constant 0 : index
    %c0_0 = arith.constant 0 : index
    %0 = vector.load %arg4[%c0, %c0_0] : memref<4x512xf32, #tpu.memory_space<vmem>>, vector<4x512xf32>
    %c0_1 = arith.constant 0 : index
    %1 = memref.load %arg2[%c0_1] : memref<1xf32, #tpu.memory_space<smem>>
    %2 = vector.broadcast %1 : f32 to vector<4x512xf32>
    %3 = arith.mulf %2, %0 : vector<4x512xf32>
    %c0_2 = arith.constant 0 : index
    %4 = memref.load %arg3[%c0_2] : memref<1xf32, #tpu.memory_space<smem>>
    %5 = vector.broadcast %4 : f32 to vector<4x512xf32>
    %6 = arith.addf %3, %5 : vector<4x512xf32>
    %c0_3 = arith.constant 0 : index
    %c0_4 = arith.constant 0 : index
    %7 = vector.load %arg5[%c0_3, %c0_4] : memref<4x512xf32, #tpu.memory_space<vmem>>, vector<4x512xf32>
    tpu.vector_store %arg5[%c0_3, %c0_4], %6 {strides = array<i32>} : memref<4x512xf32, #tpu.memory_space<vmem>>, vector<4x512xf32>,
    return
  }
  func.func @transform_0(%arg0: i32, %arg1: i32) -> i32 {
    %c0_i32 = arith.constant 0 : i32
    %c0_i32_0 = arith.constant 0 : i32
    return %c0_i32 : i32
  }
  func.func @transform_1(%arg0: i32, %arg1: i32) -> i32 {
    %c0_i32 = arith.constant 0 : i32
    %c0_i32_0 = arith.constant 0 : i32
    return %c0_i32 : i32
  }
  func.func @transform_2(%arg0: i32, %arg1: i32) -> (i32, i32) {
    %c0_i32 = arith.constant 0 : i32
    return %arg0, %arg1 : i32, i32
  }
  func.func @transform_3(%arg0: i32, %arg1: i32) -> (i32, i32) {
    %c0_i32 = arith.constant 0 : i32
    return %arg0, %arg1 : i32, i32
  }
}

</mosaic_0001>

<llo_original>
// kernel: tpu_custom_call.1
$region0: #{tpu_custom_call.1}
  #allocation0 [shape = 'u32[]', space=smem, size = 0x4, offset = 0x4, fixed_abs, tag = 'smem constant byte address 0x4 - core index']
  #allocation1 [shape = 'u32[144,128]{1,0:T(1,128)}', space=vmem, size = 0x12000, scoped, tag = 'internal scratch']
  #allocation2 [shape = 'f32[1]{0:T(128)S(6)}', space=smem, size = 0x200, scoped, tag = 'scoped memory for tpu_custom_call.1']
  #allocation3 [shape = 'f32[1]{0:T(128)S(6)}', space=smem, size = 0x200, scoped, tag = 'scoped memory for tpu_custom_call.1']
  %s0 = inlined_call_operand.<no memory space> [shape: f32[1], index: 0, kind: input, shape index: {}]
  %s1 = inlined_call_operand.<no memory space> [shape: f32[1], index: 1, kind: input, shape index: {}]
  %s2 = inlined_call_operand.hbm [shape: f32[4,512], index: 2, kind: input, shape index: {}]
  %s3 = inlined_call_operand.hbm [shape: f32[4,512], index: 3, kind: output, shape index: {}]
  %s4 = sld [smem:[#allocation0]]
  $region26: #{tpu_custom_call.1} parent=0
    _
  %s6 = ssub.s32 1, %s4
  %s7 = scalar_select 0, %s6, %s4
  %8 = sst [smem:[#allocation2]] %s0
  %9 = sst [smem:[#allocation3]] %s1
  $region1: #{tpu_custom_call.1} parent=0
    #allocation4 [shape = 'u8[8192]{0}', space=vmem, size = 0x2000, scoped, tag = 'input window, operand 2, single buffered']
    #allocation5 [shape = 's32[1]{0}', space=sflag, size = 0x4, scoped, tag = 'scoped memory for tpu_custom_call.1']
    #allocation6 [shape = 's32[1]{0}', space=sflag, size = 0x4, scoped, tag = 'scoped memory for tpu_custom_call.1']
    #allocation7 [shape = 'u8[8192]{0}', space=vmem, size = 0x2000, scoped, tag = 'output window, operand 0, single buffered']
    %10 = vsyncpa [#allocation5], 0
    %11 = vsyncpa [#allocation6], 0
    // Predicated region
    $region2: #{tpu_custom_call.1} parent=1 // pred_check
      _
    $region3: #{tpu_custom_call.1} parent=1 // pred_check_branch
      %13 = sbr.rel (0) target = $region5
    $region4: #{tpu_custom_call.1} parent=1 // pred_region
      _
    $region5: #{tpu_custom_call.1} parent=1 // pred_fallthru
      _
    // Predicated region
    $region6: #{tpu_custom_call.1} parent=1 // pred_check
      _
    $region7: #{tpu_custom_call.1} parent=1 // pred_check_branch
      %15 = sbr.rel (0) target = $region9
    $region8: #{tpu_custom_call.1} parent=1 // pred_region
      _
    $region9: #{tpu_custom_call.1} parent=1 // pred_fallthru
      _
    // Predicated region
    $region10: #{tpu_custom_call.1} parent=1 // pred_check
      _
    $region11: #{tpu_custom_call.1} parent=1 // pred_check_branch
      %17 = sbr.rel (0) target = $region13
    $region12: #{tpu_custom_call.1} parent=1 // pred_region
      %s19 = ssub.s32 256, 256
      %20 = vsyncadd [#allocation5], %s19
      %s22 = sshll.u32 [#allocation4], 4
      %s23 = int_to_ptr.vmem [resolvable:$true] %s22
      %25 = dma.hbm_to_vmem [thread:$0]  %s2, 256, %s23, [#allocation5]
    $region13: #{tpu_custom_call.1} parent=1 // pred_fallthru
      _
    // Predicated region
    $region14: #{tpu_custom_call.1} parent=1 // pred_check
      _
    $region15: #{tpu_custom_call.1} parent=1 // pred_check_branch
      %27 = sbr.rel (0) target = $region17
    $region16: #{tpu_custom_call.1} parent=1 // pred_region
      %28 = dma.done [#allocation5], 256
    $region17: #{tpu_custom_call.1} parent=1 // pred_fallthru
      _
    %v29 = vld [vmem:[#allocation4] sm:$0xff]
    %v30 = vld [vmem:[#allocation4 + $0x8] sm:$0xff]
    %s31 = sld [smem:[#allocation2]]
    %v32 = vstv %s31
    %v33 = vmul.f32 %v32, %v29
    %v34 = vmul.f32 %v32, %v30
    %s35 = sld [smem:[#allocation3]]
    %v36 = vstv %s35
    %v37 = vadd.f32 %v33, %v36
    %v38 = vadd.f32 %v34, %v36
    %39 = vst [vmem:[#allocation7] sm:$0xff] %v37
    %40 = vst [vmem:[#allocation7 + $0x8] sm:$0xff] %v38
    // Predicated region
    $region18: #{tpu_custom_call.1} parent=1 // pred_check
      _
    $region19: #{tpu_custom_call.1} parent=1 // pred_check_branch
      %42 = sbr.rel (0) target = $region21
    $region20: #{tpu_custom_call.1} parent=1 // pred_region
      %s44 = ssub.s32 256, 256
      %45 = vsyncadd [#allocation6], %s44
      %s47 = sshll.u32 [#allocation7], 4
      %s48 = int_to_ptr.vmem [resolvable:$true] %s47
      %50 = dma.vmem_to_hbm [thread:$0]  %s48, 256, %s3, [#allocation6]
    $region21: #{tpu_custom_call.1} parent=1 // pred_fallthru
      _
    // Predicated region
    $region22: #{tpu_custom_call.1} parent=1 // pred_check
      _
    $region23: #{tpu_custom_call.1} parent=1 // pred_check_branch
      %52 = sbr.rel (0) target = $region25
    $region24: #{tpu_custom_call.1} parent=1 // pred_region
      %53 = dma.done [#allocation6], 256
    $region25: #{tpu_custom_call.1} parent=1 // pred_fallthru
      _
    %54 = vsyncpa [#allocation5], 1
    %55 = vsyncpa [#allocation6], 1

</llo_original>
